<compile_context>
chip_gen: v6e
topology: v6e:2x2x1
jax: 0.10.0
libtpu: 0.0.40
codegen_flags: <defaults>
</compile_context>

<pallas_src>
import jax
import jax.numpy as jnp
from jax.experimental import pallas as pl
from jax.experimental.pallas import tpu as pltpu


_VPU_CHANNEL_MAX = 16          # C at or below this -> unrolled VPU conv path
_LANE_CAP = 32768              # ~0.5-2 MiB/buffer; HBM roofline already reached
_MIN_PROGRAMS = 4              # keep >= 4 grid programs when legally possible


def _vmem_capacity_bytes():
    """Per-core VMEM capacity; conservative fallback (v7x) if query fails."""
    try:
        return int(pltpu.get_tpu_info().vmem_capacity_bytes)
    except Exception:
        return 64 * 1024 * 1024


def _attention_kernel_vpu(x_ref, w_ref, shift_ref, o_ref):
    # Small-C path: unroll the 1x1 conv into C broadcast-FMA ops on the VPU.
    # x_ref: (1, C, TS), w_ref: (C, C) BN-folded weight, shift_ref: (C, 1).
    xf = x_ref[0].astype(jnp.float32)                 # hoisted single cast
    w = w_ref[...].astype(jnp.float32)                # tiny (C, C) tile
    C = xf.shape[0]
    # TODO(synk): on v6e/v7x a bf16 FMA/multiply path would halve VPU work for
    # bf16 activations; kept in f32 so v5e (no bf16 VPU/EUP) stays correct/fast.
    y = shift_ref[...] + w[:, 0:1] * xf[0:1, :]       # (C, TS)
    for i in range(1, C):                             # trace-time unroll
        y = y + w[:, i:i + 1] * xf[i:i + 1, :]
    att = jax.nn.sigmoid(y)                           # EUP
    o_ref[0] = (att * xf).astype(o_ref.dtype)


def _attention_kernel_mxu(x_ref, w_ref, shift_ref, o_ref):
    # Large-C path: MXU matmul. Weight dtype is matched to x in the wrapper
    # (bf16 dot when activations are bf16), f32 accumulation.
    x = x_ref[0]                                      # (C, TS)
    y = jnp.dot(w_ref[...], x, preferred_element_type=jnp.float32)
    att = jax.nn.sigmoid(y + shift_ref[...])
    # TODO(synk): on v6e/v7x the final multiply could stay in bf16.
    o_ref[0] = (att * x.astype(jnp.float32)).astype(o_ref.dtype)


def _choose_tile_s(S, C, itemsize, n_batch, vmem_cap):
    """Spatial tile size: VMEM-safe, lane-capped, and grid never degenerate."""
    if S <= 128:
        return S                        # cannot split legally; full extent

    sub = max(8, 32 // itemsize)        # sublane multiple: f32=8, bf16=16, i8=32
    c_pad = -(-C // sub) * sub          # padded channel rows of the x/o tiles
    c_pad32 = -(-C // 8) * 8            # padded rows of the f32 intermediates
    # Bytes per lane of spatial tile:
    #   in + out, double-buffered:      2 arrays * 2 buffers * c_pad * itemsize
    #   in-kernel f32 intermediates:    ~3 tile-sized buffers (xf, y, att)
    per_lane = 4 * c_pad * itemsize + 3 * c_pad32 * 4

    budget = min(vmem_cap // 3, 32 * 1024 * 1024)
    c_lanes = -(-C // 128) * 128
    static_bytes = 2 * c_pad32 * (c_lanes + 128) * 4   # weight + shift blocks
    avail = max(budget - static_bytes, per_lane * 128)

    max_tile = min(avail // per_lane, _LANE_CAP)
    # Keep >= _MIN_PROGRAMS programs so both v7x TensorCores run and the
    # pipeline has something to overlap.
    if n_batch < _MIN_PROGRAMS:
        want_s = -(-_MIN_PROGRAMS // n_batch)
        max_tile = min(max_tile, max(S // want_s, 128))

    tile_s = max((max_tile // 128) * 128, 128)
    return S if tile_s >= S else tile_s


@jax.jit
def attention_module_forward(x_nchw, conv_w, gamma, beta, run_mean, run_var,
                             eps=1e-5):
    """Forward of AttentionModule: sigmoid(BN(conv1x1(x))) * x.

    x_nchw : (N, C, H, W)   activations
    conv_w : (C, C, 1, 1)   Conv2d weight (groups=1, bias=False)
    gamma, beta, run_mean, run_var : (C,) BatchNorm2d params / running stats
    """
    # TODO(synk): groups > 1 (grouped 1x1 conv) not implemented; groups=1 only.
    N, C, H, W = x_nchw.shape
    S = H * W

    use_vpu = C <= _VPU_CHANNEL_MAX
    # bf16 MXU pass (v6e/v7x) when activations are bf16; f32 elsewhere.
    w_dtype = jnp.bfloat16 if (not use_vpu and x_nchw.dtype == jnp.bfloat16) \
        else jnp.float32

    # Fold eval-mode BN into the weight rows (scale) and a per-channel shift.
    scale = gamma / jnp.sqrt(run_var + eps)                       # (C,)
    w_scaled = (conv_w.reshape(C, C).astype(jnp.float32)
                * scale[:, None]).astype(w_dtype)
    shift = (beta - run_mean * scale).reshape(C, 1).astype(jnp.float32)

    # Free reshape: NCHW -> (N, C, S); spatial goes on the lane axis.
    x3 = x_nchw.reshape(N, C, S)

    vmem_cap = _vmem_capacity_bytes()
    tile_s = _choose_tile_s(S, C, x_nchw.dtype.itemsize, N, vmem_cap)
    num_s = pl.cdiv(S, tile_s)

    # Weight spec: constant index_map; single-buffer it when it is big enough
    # for the double-buffer reservation to matter (>= 1 MiB).
    w_itemsize = 2 if w_dtype == jnp.bfloat16 else 4
    w_spec_kwargs = {}
    if C * C * w_itemsize >= (1 << 20):
        w_spec_kwargs["pipeline_mode"] = pl.Buffered(1)
    w_spec = pl.BlockSpec((C, C), lambda n, s: (0, 0), **w_spec_kwargs)

    kernel = _attention_kernel_vpu if use_vpu else _attention_kernel_mxu

    out3 = pl.pallas_call(
        kernel,
        out_shape=jax.ShapeDtypeStruct((N, C, S), x_nchw.dtype),
        grid_spec=pltpu.PrefetchScalarGridSpec(
            num_scalar_prefetch=0,
            grid=(N, num_s),
            in_specs=[
                pl.BlockSpec((1, C, tile_s), lambda n, s: (n, 0, s)),  # x tile
                w_spec,                                                # weight
                pl.BlockSpec((C, 1), lambda n, s: (0, 0)),             # BN shift
            ],
            out_specs=pl.BlockSpec((1, C, tile_s), lambda n, s: (n, 0, s)),
        ),
        compiler_params=pltpu.CompilerParams(
            dimension_semantics=("parallel", "parallel"),
            # Generation-aware: 32 MiB on v7x (64 MiB VMEM), 64 MiB on v5e/v6e.
            vmem_limit_bytes=min(vmem_cap // 2, 64 * 1024 * 1024),
        ),
    )(x3, w_scaled, shift)

    return out3.reshape(N, C, H, W)


def _reference(x_nchw, conv_w, gamma, beta, run_mean, run_var, eps=1e-5):
    # Pure-JAX reference of the PyTorch forward (eval-mode BN).
    N, C, H, W = x_nchw.shape
    w = conv_w.reshape(C, C)  # (C_out, C_in)
    y = jnp.einsum("nchw,oc->nohw", x_nchw, w)
    scale = gamma / jnp.sqrt(run_var + eps)
    shift = beta - run_mean * scale
    bn = y * scale[None, :, None, None] + shift[None, :, None, None]
    return jax.nn.sigmoid(bn) * x_nchw


if __name__ == "__main__":
    # Small shapes consistent with the module: batch=2, channels=4, 16x16.
    N, C, H, W = 2, 4, 16, 16

    key = jax.random.PRNGKey(0)
    k_x, k_w, k_g, k_b, k_m, k_v = jax.random.split(key, 6)

    x = jax.random.normal(k_x, (N, C, H, W), dtype=jnp.float32)
    conv_w = jax.random.normal(k_w, (C, C, 1, 1), dtype=jnp.float32) * 0.3
    gamma = 1.0 + 0.1 * jax.random.normal(k_g, (C,), dtype=jnp.float32)
    beta = 0.1 * jax.random.normal(k_b, (C,), dtype=jnp.float32)
    run_mean = 0.1 * jax.random.normal(k_m, (C,), dtype=jnp.float32)
    run_var = jnp.abs(1.0 + 0.1 * jax.random.normal(k_v, (C,), dtype=jnp.float32))

    out = attention_module_forward(x, conv_w, gamma, beta, run_mean, run_var)
    out = jax.block_until_ready(out)

    ref = _reference(x, conv_w, gamma, beta, run_mean, run_var)
    assert out.shape == x.shape
    assert jnp.allclose(out, ref, atol=1e-5, rtol=1e-5), "mismatch vs reference"

    print("KERNEL_OK")
</pallas_src>

<mosaic_0001>
module attributes {stable_mosaic.version = 11 : i64} {
  func.func @_attention_kernel_vpu(%arg0: i32, %arg1: i32, %arg2: memref<1x4x128xf32, #tpu.memory_space<vmem>>, %arg3: memref<4x4xf32, #tpu.memory_space<vmem>>, %arg4: memref<4x1xf32, #tpu.memory_space<vmem>>, %arg5: memref<1x4x128xf32, #tpu.memory_space<vmem>>) attributes {dimension_semantics = [#tpu.dimension_semantics<parallel>, #tpu.dimension_semantics<parallel>], iteration_bounds = array<i64: 2, 2>, scalar_prefetch = 0 : i64, scratch_operands = 0 : i64, tpu.core_type = #tpu.core_type<tc>, window_params = [{transform_indices = @transform_0, window_bounds = array<i64: 1, 4, 128>}, {pipeline_mode = #tpu.pipeline_mode<synchronous>, transform_indices = @transform_1, window_bounds = array<i64: 4, 4>}, {pipeline_mode = #tpu.pipeline_mode<synchronous>, transform_indices = @transform_2, window_bounds = array<i64: 4, 1>}, {transform_indices = @transform_3, window_bounds = array<i64: 1, 4, 128>}]} {
    %c0 = arith.constant 0 : index
    %c0_0 = arith.constant 0 : index
    %c0_1 = arith.constant 0 : index
    %0 = vector.load %arg2[%c0, %c0_0, %c0_1] : memref<1x4x128xf32, #tpu.memory_space<vmem>>, vector<1x4x128xf32>
    %1 = vector.shape_cast %0 : vector<1x4x128xf32> to vector<4x128xf32>
    %c0_2 = arith.constant 0 : index
    %c0_3 = arith.constant 0 : index
    %2 = vector.load %arg3[%c0_2, %c0_3] : memref<4x4xf32, #tpu.memory_space<vmem>>, vector<4x4xf32>
    %c0_4 = arith.constant 0 : index
    %c0_5 = arith.constant 0 : index
    %3 = vector.load %arg4[%c0_4, %c0_5] : memref<4x1xf32, #tpu.memory_space<vmem>>, vector<4x1xf32>
    %4 = vector.extract_strided_slice %2 {offsets = [0, 0], sizes = [4, 1], strides = [1, 1]} : vector<4x4xf32> to vector<4x1xf32>
    %5 = vector.extract_strided_slice %1 {offsets = [0, 0], sizes = [1, 128], strides = [1, 1]} : vector<4x128xf32> to vector<1x128xf32>
    %6 = vector.broadcast %4 : vector<4x1xf32> to vector<4x128xf32>
    %7 = vector.broadcast %5 : vector<1x128xf32> to vector<4x128xf32>
    %8 = arith.mulf %6, %7 : vector<4x128xf32>
    %9 = vector.broadcast %3 : vector<4x1xf32> to vector<4x128xf32>
    %10 = arith.addf %9, %8 : vector<4x128xf32>
    %11 = vector.extract_strided_slice %2 {offsets = [0, 1], sizes = [4, 1], strides = [1, 1]} : vector<4x4xf32> to vector<4x1xf32>
    %12 = vector.extract_strided_slice %1 {offsets = [1, 0], sizes = [1, 128], strides = [1, 1]} : vector<4x128xf32> to vector<1x128xf32>
    %13 = vector.broadcast %11 : vector<4x1xf32> to vector<4x128xf32>
    %14 = vector.broadcast %12 : vector<1x128xf32> to vector<4x128xf32>
    %15 = arith.mulf %13, %14 : vector<4x128xf32>
    %16 = arith.addf %10, %15 : vector<4x128xf32>
    %17 = vector.extract_strided_slice %2 {offsets = [0, 2], sizes = [4, 1], strides = [1, 1]} : vector<4x4xf32> to vector<4x1xf32>
    %18 = vector.extract_strided_slice %1 {offsets = [2, 0], sizes = [1, 128], strides = [1, 1]} : vector<4x128xf32> to vector<1x128xf32>
    %19 = vector.broadcast %17 : vector<4x1xf32> to vector<4x128xf32>
    %20 = vector.broadcast %18 : vector<1x128xf32> to vector<4x128xf32>
    %21 = arith.mulf %19, %20 : vector<4x128xf32>
    %22 = arith.addf %16, %21 : vector<4x128xf32>
    %23 = vector.extract_strided_slice %2 {offsets = [0, 3], sizes = [4, 1], strides = [1, 1]} : vector<4x4xf32> to vector<4x1xf32>
    %24 = vector.extract_strided_slice %1 {offsets = [3, 0], sizes = [1, 128], strides = [1, 1]} : vector<4x128xf32> to vector<1x128xf32>
    %25 = vector.broadcast %23 : vector<4x1xf32> to vector<4x128xf32>
    %26 = vector.broadcast %24 : vector<1x128xf32> to vector<4x128xf32>
    %27 = arith.mulf %25, %26 : vector<4x128xf32>
    %28 = arith.addf %22, %27 : vector<4x128xf32>
    %29 = arith.negf %28 : vector<4x128xf32>
    %30 = math.exp %29 : vector<4x128xf32>
    %cst = arith.constant 1.000000e+00 : f32
    %31 = vector.broadcast %cst : f32 to vector<4x128xf32>
    %32 = arith.addf %31, %30 : vector<4x128xf32>
    %33 = arith.divf %31, %32 : vector<4x128xf32>
    %34 = arith.mulf %33, %1 : vector<4x128xf32>
    %c0_6 = arith.constant 0 : index
    %c0_7 = arith.constant 0 : index
    %c0_8 = arith.constant 0 : index
    %35 = vector.load %arg5[%c0_6, %c0_7, %c0_8] : memref<1x4x128xf32, #tpu.memory_space<vmem>>, vector<1x4x128xf32>
    %36 = vector.shape_cast %35 : vector<1x4x128xf32> to vector<4x128xf32>
    %37 = vector.shape_cast %34 : vector<4x128xf32> to vector<1x4x128xf32>
    tpu.vector_store %arg5[%c0_6, %c0_7, %c0_8], %37 {strides = array<i32>} : memref<1x4x128xf32, #tpu.memory_space<vmem>>, vector<1x4x128xf32>,
    return
  }
  func.func @transform_0(%arg0: i32, %arg1: i32) -> (i32, i32, i32) {
    %c0_i32 = arith.constant 0 : i32
    %c0_i32_0 = arith.constant 0 : i32
    return %arg0, %c0_i32, %arg1 : i32, i32, i32
  }
  func.func @transform_1(%arg0: i32, %arg1: i32) -> (i32, i32) {
    %c0_i32 = arith.constant 0 : i32
    %c0_i32_0 = arith.constant 0 : i32
    %c0_i32_1 = arith.constant 0 : i32
    return %c0_i32, %c0_i32_0 : i32, i32
  }
  func.func @transform_2(%arg0: i32, %arg1: i32) -> (i32, i32) {
    %c0_i32 = arith.constant 0 : i32
    %c0_i32_0 = arith.constant 0 : i32
    %c0_i32_1 = arith.constant 0 : i32
    return %c0_i32, %c0_i32_0 : i32, i32
  }
  func.func @transform_3(%arg0: i32, %arg1: i32) -> (i32, i32, i32) {
    %c0_i32 = arith.constant 0 : i32
    %c0_i32_0 = arith.constant 0 : i32
    return %arg0, %c0_i32, %arg1 : i32, i32, i32
  }
}

</mosaic_0001>

<llo_original>
// kernel: attention_module_forward.1
$region0: #{attention_module_forward.1}
  #allocation0 [shape = 'u32[]', space=smem, size = 0x4, offset = 0x4, fixed_abs, tag = 'smem constant byte address 0x4 - core index']
  #allocation1 [shape = 'u32[144,128]{1,0:T(1,128)}', space=vmem, size = 0x12000, scoped, tag = 'internal scratch']
  %s0 = inlined_call_operand.vmem [shape: f32[2,4,256], index: 0, kind: input, shape index: {}]
  %s1 = inlined_call_operand.vmem [shape: f32[4,4], index: 1, kind: input, shape index: {}]
  %s2 = inlined_call_operand.vmem [shape: f32[4,1], index: 2, kind: input, shape index: {}]
  %s3 = inlined_call_operand.vmem [shape: f32[2,4,256], index: 3, kind: output, shape index: {}]
  %s4 = sld [smem:[#allocation0]]
  $region45: #{attention_module_forward.1} parent=0
    _
  %s6 = ssub.s32 1, %s4
  %s7 = scalar_select 0, %s6, %s4
  loop: start=0, step=1, limit=6
  $region2: #{attention_module_forward.1} parent=0 // loop_pre_header
    _
  $region3: #{attention_module_forward.1} parent=0 // loop_header
    %s9 = sphi 0, %s13
    %p10 = scmp.ge.s32.totalorder %s9, 6
    %s16 = sphi 0, %s28
    %s17 = sphi 0, %s24
    %s18 = sphi 0, %s16
    %s19 = sphi 0, %s17
    %s20 = sphi 0, %s18
    %s21 = sphi 0, %s19
    %s33 = sphi 0, %s35
    %s36 = sphi 0, %s33
    %s37 = sphi 0, %s36
    %s53 = sphi 0, %s37
    %s57 = sphi 0, %s57
    %s59 = sphi 0, %s57
    %s60 = sphi 0, %s59
    %s74 = sphi 0, %s60
    %s78 = sphi 0, %s78
    %s80 = sphi 0, %s78
    %s81 = sphi 0, %s80
    %s95 = sphi 0, %s81
    %s103 = sphi 0, %s105
    %s106 = sphi 0, %s103
    %s107 = sphi 0, %s106
    %s123 = sphi 0, %s107
  $region4: #{attention_module_forward.1} parent=0 // loop_header_branch
    %12 = sbr.rel (%p10) target = $region8
  $region5: #{attention_module_forward.1} parent=0 // loop_body
    %s14 = ssub.s32 %s9, 1
    %s15 = ssub.s32 %s9, 2
    %s22 = sadd.s32 1, %s17
    %p23 = scmp.ge.s32.totalorder %s22, 2
    %s24 = scalar_select %p23, 0, %s22
    %s25 = sadd.s32 1, %s16
    %s26 = scalar_select %p23, %s25, %s16
    %p27 = scmp.ge.s32.totalorder %s26, 2
    %s28 = scalar_select %p27, 0, %s26
    %s29 = ssub.s32 %s16, %s28
    %s30 = ssub.s32 %s17, %s24
    %s31 = sor.u32 %s29, %s30
    %p32 = scmp.eq.s32.totalorder %s31, 0
    %s34 = sadd.s32 %s33, 1
    %s35 = scalar_select %p32, %s33, %s34
    %p38 = pneg %p32
    %p39 = scmp.eq.s32.totalorder %s9, 3
    %p40 = por %p38, %p39
    %p41 = scmp.ne.s32.totalorder %s33, %s36
    %p42 = scmp.eq.s32.totalorder %s9, 0
    %p43 = por %p41, %p42
    %p44 = scmp.ne.s32.totalorder %s33, %s36
    %p45 = scmp.eq.s32.totalorder %s14, 3
    %p46 = por %p44, %p45
    %p47 = scmp.ne.s32.totalorder %s36, %s37
    %p48 = scmp.eq.s32.totalorder %s14, 0
    %p49 = por %p47, %p48
    %p50 = scmp.ne.s32.totalorder %s36, %s37
    %p51 = scmp.eq.s32.totalorder %s15, 3
    %p52 = por %p50, %p51
    %p54 = scmp.ne.s32.totalorder %s37, %s53
    %p55 = scmp.eq.s32.totalorder %s15, 0
    %p56 = por %p54, %p55
    %s58 = sadd.s32 %s57, 1
    %p61 = scmp.eq.s32.totalorder %s9, 3
    %p62 = scmp.ne.s32.totalorder %s57, %s59
    %p63 = scmp.eq.s32.totalorder %s9, 0
    %p64 = por %p62, %p63
    %p65 = scmp.ne.s32.totalorder %s57, %s59
    %p66 = scmp.eq.s32.totalorder %s14, 3
    %p67 = por %p65, %p66
    %p68 = scmp.ne.s32.totalorder %s59, %s60
    %p69 = scmp.eq.s32.totalorder %s14, 0
    %p70 = por %p68, %p69
    %p71 = scmp.ne.s32.totalorder %s59, %s60
    %p72 = scmp.eq.s32.totalorder %s15, 3
    %p73 = por %p71, %p72
    %p75 = scmp.ne.s32.totalorder %s60, %s74
    %p76 = scmp.eq.s32.totalorder %s15, 0
    %p77 = por %p75, %p76
    %s79 = sadd.s32 %s78, 1
    %p82 = scmp.eq.s32.totalorder %s9, 3
    %p83 = scmp.ne.s32.totalorder %s78, %s80
    %p84 = scmp.eq.s32.totalorder %s9, 0
    %p85 = por %p83, %p84
    %p86 = scmp.ne.s32.totalorder %s78, %s80
    %p87 = scmp.eq.s32.totalorder %s14, 3
    %p88 = por %p86, %p87
    %p89 = scmp.ne.s32.totalorder %s80, %s81
    %p90 = scmp.eq.s32.totalorder %s14, 0
    %p91 = por %p89, %p90
    %p92 = scmp.ne.s32.totalorder %s80, %s81
    %p93 = scmp.eq.s32.totalorder %s15, 3
    %p94 = por %p92, %p93
    %p96 = scmp.ne.s32.totalorder %s81, %s95
    %p97 = scmp.eq.s32.totalorder %s15, 0
    %p98 = por %p96, %p97
    %s99 = ssub.s32 %s16, %s28
    %s100 = ssub.s32 %s17, %s24
    %s101 = sor.u32 %s99, %s100
    %p102 = scmp.eq.s32.totalorder %s101, 0
    %s104 = sadd.s32 %s103, 1
    %s105 = scalar_select %p102, %s103, %s104
    %p108 = pneg %p102
    %p109 = scmp.eq.s32.totalorder %s9, 3
    %p110 = por %p108, %p109
    %p111 = scmp.ne.s32.totalorder %s103, %s106
    %p112 = scmp.eq.s32.totalorder %s9, 0
    %p113 = por %p111, %p112
    %p114 = scmp.ne.s32.totalorder %s103, %s106
    %p115 = scmp.eq.s32.totalorder %s14, 3
    %p116 = por %p114, %p115
    %p117 = scmp.ne.s32.totalorder %s106, %s107
    %p118 = scmp.eq.s32.totalorder %s14, 0
    %p119 = por %p117, %p118
    %p120 = scmp.ne.s32.totalorder %s106, %s107
    %p121 = scmp.eq.s32.totalorder %s15, 3
    %p122 = por %p120, %p121
    %p124 = scmp.ne.s32.totalorder %s107, %s123
    %p125 = scmp.eq.s32.totalorder %s15, 0
    %p126 = por %p124, %p125
    %p127 = scmp.le.s32.totalorder 1, %s9
    %p128 = scmp.lt.s32.totalorder %s9, 5
    %p129 = pnand %p127, %p128
    %p130 = pneg %p129
    // Predicated region
    $region9: #{attention_module_forward.1} parent=5 // pred_check
      _
    $region10: #{attention_module_forward.1} parent=5 // pred_check_branch
      %132 = sbr.rel (%p129) target = $region12
    $region11: #{attention_module_forward.1} parent=5 // pred_region
      %s133 = ssub.s32 %s9, 1
      // Predicated region
      $region13: #{attention_module_forward.1} parent=11 // pred_check
        %p134 = pneg %p70
      $region14: #{attention_module_forward.1} parent=11 // pred_check_branch
        %136 = sbr.rel (%p134) target = $region16
      $region15: #{attention_module_forward.1} parent=11 // pred_region
        _
      $region16: #{attention_module_forward.1} parent=11 // pred_fallthru
        _
      // Predicated region
      $region17: #{attention_module_forward.1} parent=11 // pred_check
        %p137 = pneg %p91
      $region18: #{attention_module_forward.1} parent=11 // pred_check_branch
        %139 = sbr.rel (%p137) target = $region20
      $region19: #{attention_module_forward.1} parent=11 // pred_region
        _
      $region20: #{attention_module_forward.1} parent=11 // pred_fallthru
        _
    $region12: #{attention_module_forward.1} parent=5 // pred_fallthru
      _
    %p140 = scmp.lt.s32.totalorder %s9, 4
    // Predicated region
    $region21: #{attention_module_forward.1} parent=5 // pred_check
      %p141 = pneg %p140
    $region22: #{attention_module_forward.1} parent=5 // pred_check_branch
      %143 = sbr.rel (%p141) target = $region24
    $region23: #{attention_module_forward.1} parent=5 // pred_region
      // Predicated region
      $region25: #{attention_module_forward.1} parent=23 // pred_check
        %p144 = pneg %p43
      $region26: #{attention_module_forward.1} parent=23 // pred_check_branch
        %146 = sbr.rel (%p144) target = $region28
      $region27: #{attention_module_forward.1} parent=23 // pred_region
        %p147 = scmp.lt.s32.totalorder %s16, 1
        %s148 = scalar_select %p147, %s16, 1
        %p149 = scmp.lt.s32.totalorder %s17, 1
        %s150 = scalar_select %p149, %s17, 1
        %s151 = smul.addr %s148, 2
        %s152 = sadd.s32 %s150, %s151
        %s153 = smul.addr %s152, 4
        %s154 = scalar_lea.vmem %s0, %s153
      $region28: #{attention_module_forward.1} parent=23 // pred_fallthru
        _
    $region24: #{attention_module_forward.1} parent=5 // pred_fallthru
      _
    %p155 = scmp.le.s32.totalorder 1, %s9
    %p156 = scmp.lt.s32.totalorder %s9, 5
    %p157 = pnand %p155, %p156
    %p158 = pneg %p157
    // Predicated region
    $region29: #{attention_module_forward.1} parent=5 // pred_check
      _
    $region30: #{attention_module_forward.1} parent=5 // pred_check_branch
      %160 = sbr.rel (%p157) target = $region32
    $region31: #{attention_module_forward.1} parent=5 // pred_region
      %s161 = ssub.s32 %s9, 1
      %p162 = scmp.lt.s32.totalorder %s18, 1
      %s163 = scalar_select %p162, %s18, 1
      %p164 = scmp.lt.s32.totalorder %s19, 1
      %s165 = scalar_select %p164, %s19, 1
      %s166 = smul.addr %s163, 2
      %s167 = sadd.s32 %s165, %s166
      %s168 = smul.addr %s167, 4
      %s169 = scalar_lea.vmem %s0, %s168
      %p170 = pneg %p49
      %p171 = pneg %p46
      %p172 = pneg %p70
      %p173 = pneg %p67
      %p174 = pneg %p91
      %p175 = pneg %p88
      %p176 = pneg %p119
      %p177 = pneg %p116
      %p178 = scmp.lt.s32.totalorder %s18, 1
      %s179 = scalar_select %p178, %s18, 1
      %p180 = scmp.lt.s32.totalorder %s19, 1
      %s181 = scalar_select %p180, %s19, 1
      %s182 = smul.addr %s179, 2
      %s183 = sadd.s32 %s181, %s182
      %s184 = smul.addr %s183, 4
      %s185 = scalar_lea.vmem %s3, %s184
      %p186 = scmp.lt.s32.totalorder %s18, 1
      %s187 = scalar_select %p186, %s18, 1
      %p188 = scmp.lt.s32.totalorder %s19, 1
      %s189 = scalar_select %p188, %s19, 1
      %s190 = smul.addr %s187, 2
      %s191 = sadd.s32 %s189, %s190
      %s192 = smul.addr %s191, 4
      %s193 = scalar_lea.vmem %s0, %s192
      %p194 = scmp.lt.s32.totalorder %s18, 1
      %s195 = scalar_select %p194, %s18, 1
      %p196 = scmp.lt.s32.totalorder %s19, 1
      %s197 = scalar_select %p196, %s19, 1
      %s198 = smul.addr %s195, 2
      %s199 = sadd.s32 %s197, %s198
      %s200 = smul.addr %s199, 4
      %s201 = scalar_lea.vmem %s3, %s200
      %v202 = vld [vmem:[%s193] sm:$0xf]
      %v203 = vld [vmem:[%s1] sm:$0xf]
      %v204 = vld [vmem:[%s2] sm:$0xf]
      %206 = vset.pattern.permute.xlu0 0
      %207 = vperm.xlu0 %206, %v203
      %v208 = vpop.permute.xlu0 %207
      %v210 = vlaneseq
      %v211 = vshrl.u32 %v210, 7
      %v212 = vsub.s32 0, %v211
      %v213 = vrot.slane %v202, %v212
      %v214 = vmul.f32 %v208, %v213
      %216 = vset.pattern.permute.xlu0 0
      %217 = vperm.xlu0 %216, %v204
      %v218 = vpop.permute.xlu0 %217
      %v220 = vadd.f32 %v218, %v214
      %221 = vset.pattern.permute.xlu0 1
      %222 = vperm.xlu0 %221, %v203
      %v223 = vpop.permute.xlu0 %222
      %v225 = vlaneseq
      %v226 = vshrl.u32 %v225, 7
      %v227 = vsub.s32 1, %v226
      %v228 = vrot.slane %v202, %v227
      %v229 = vmul.f32 %v223, %v228
      %v230 = vadd.f32 %v220, %v229
      %231 = vset.pattern.permute.xlu0 2
      %232 = vperm.xlu0 %231, %v203
      %v233 = vpop.permute.xlu0 %232
      %v235 = vlaneseq
      %v236 = vshrl.u32 %v235, 7
      %v237 = vsub.s32 2, %v236
      %v238 = vrot.slane %v202, %v237
      %v239 = vmul.f32 %v233, %v238
      %v240 = vadd.f32 %v230, %v239
      %241 = vset.pattern.permute.xlu0 3
      %242 = vperm.xlu0 %241, %v203
      %v243 = vpop.permute.xlu0 %242
      %v245 = vlaneseq
      %v246 = vshrl.u32 %v245, 7
      %v247 = vsub.s32 3, %v246
      %v248 = vrot.slane %v202, %v247
      %v249 = vmul.f32 %v243, %v248
      %v250 = vadd.f32 %v240, %v249
      %v251 = vxor.u32 %v250, 2147483648
      %v252 = vmul.f32 %v251, 1.442695
      %v253 = vpow.pop %v252
      %v254 = vadd.f32 %v253, 1.0
      %v255 = vrcp.pop %v254
      %v256 = vmul.f32 1.0, %v255
      %v257 = vmul.f32 %v256, %v202
      %258 = vst [vmem:[%s201] sm:$0xf] %v257
      %p259 = scmp.lt.s32.totalorder %s18, 1
      %s260 = scalar_select %p259, %s18, 1
      %p261 = scmp.lt.s32.totalorder %s19, 1
      %s262 = scalar_select %p261, %s19, 1
      %s263 = smul.addr %s260, 2
      %s264 = sadd.s32 %s262, %s263
      %s265 = smul.addr %s264, 4
      %s266 = scalar_lea.vmem %s3, %s265
      // Predicated region
      $region33: #{attention_module_forward.1} parent=31 // pred_check
        %p267 = pneg %p116
      $region34: #{attention_module_forward.1} parent=31 // pred_check_branch
        %269 = sbr.rel (%p267) target = $region36
      $region35: #{attention_module_forward.1} parent=31 // pred_region
        _
      $region36: #{attention_module_forward.1} parent=31 // pred_fallthru
        _
    $region32: #{attention_module_forward.1} parent=5 // pred_fallthru
      _
    %p270 = scmp.le.s32.totalorder 2, %s9
    // Predicated region
    $region37: #{attention_module_forward.1} parent=5 // pred_check
      %p271 = pneg %p270
    $region38: #{attention_module_forward.1} parent=5 // pred_check_branch
      %273 = sbr.rel (%p271) target = $region40
    $region39: #{attention_module_forward.1} parent=5 // pred_region
      %s274 = ssub.s32 %s9, 2
      // Predicated region
      $region41: #{attention_module_forward.1} parent=39 // pred_check
        %p275 = pneg %p122
      $region42: #{attention_module_forward.1} parent=39 // pred_check_branch
        %277 = sbr.rel (%p275) target = $region44
      $region43: #{attention_module_forward.1} parent=39 // pred_region
        %p278 = scmp.lt.s32.totalorder %s20, 1
        %s279 = scalar_select %p278, %s20, 1
        %p280 = scmp.lt.s32.totalorder %s21, 1
        %s281 = scalar_select %p280, %s21, 1
        %s282 = smul.addr %s279, 2
        %s283 = sadd.s32 %s281, %s282
        %s284 = smul.addr %s283, 4
        %s285 = scalar_lea.vmem %s3, %s284
      $region44: #{attention_module_forward.1} parent=39 // pred_fallthru
        _
    $region40: #{attention_module_forward.1} parent=5 // pred_fallthru
      _
  $region6: #{attention_module_forward.1} parent=0 // loop_footer
    %s13 = sadd.s32 1, %s9
  $region7: #{attention_module_forward.1} parent=0 // loop_footer_branch
    %8 = sbr.rel target = $region3
  $region8: #{attention_module_forward.1} parent=0 // loop_exit
    _

</llo_original>
